<compile_context>
chip_gen: v7x
topology: tpu7x:2x2x1
jax: 0.10.0
libtpu: 0.0.40
codegen_flags: <defaults>
</compile_context>

<pallas_src>
import functools

import jax
import jax.numpy as jnp
from jax.experimental import pallas as pl
from jax.experimental.pallas import tpu as pltpu


def _round_up(x, m):
    return ((x + m - 1) // m) * m


def _full_spec(shape):
    return pl.BlockSpec(shape, lambda *_: (0,) * len(shape))


# ----------------------------------------------------------------------------
# Kernel 1: intent head  (CLS -> tanh pooler -> folded fc1+intent_classifier)
# ----------------------------------------------------------------------------
def intent_kernel(cls_ref, wp_ref, bp_ref, w1i_ref, b1i_ref, intent_ref):
    # BERT pooler: f32 accumulation + f32 tanh (keep VPU/EUP work in f32 for v5e).
    pooled_f32 = jnp.tanh(
        jnp.dot(cls_ref[...], wp_ref[...], preferred_element_type=jnp.float32)
        + bp_ref[...]
    )
    pooled = pooled_f32.astype(w1i_ref.dtype)
    # dropout is identity at inference; fc1 and intent_classifier are pre-folded.
    intent_ref[...] = (
        jnp.dot(pooled, w1i_ref[...], preferred_element_type=jnp.float32)
        + b1i_ref[...]
    )


# ----------------------------------------------------------------------------
# Kernel 2: slot head  (folded fc2+slot_classifier), tiled over B*S rows
# ----------------------------------------------------------------------------
def slot_kernel(hs_ref, w2s_ref, b2s_ref, slot_ref):
    # dropout is identity at inference; fc2 and slot_classifier are pre-folded.
    slot_ref[...] = (
        jnp.dot(hs_ref[...], w2s_ref[...], preferred_element_type=jnp.float32)
        + b2s_ref[...]
    )


# ----------------------------------------------------------------------------
# pallas_call wrappers
# ----------------------------------------------------------------------------
def intent_head_pallas(cls_pad, wp, bp, w1i, b1i):
    Bp, _ = cls_pad.shape
    Ip = w1i.shape[1]
    operands = (cls_pad, wp, bp, w1i, b1i)
    return pl.pallas_call(
        intent_kernel,
        out_shape=jax.ShapeDtypeStruct((Bp, Ip), jnp.float32),
        grid_spec=pltpu.PrefetchScalarGridSpec(
            num_scalar_prefetch=0,
            grid=(),
            in_specs=[_full_spec(op.shape) for op in operands],
            out_specs=_full_spec((Bp, Ip)),
        ),
        compiler_params=pltpu.CompilerParams(vmem_limit_bytes=64 << 20),
    )(*operands)


def slot_head_pallas(hs_pad, w2s, b2s, *, row_tile):
    Rp, Hp = hs_pad.shape
    SLp = w2s.shape[1]
    grid = (Rp // row_tile,)
    return pl.pallas_call(
        slot_kernel,
        out_shape=jax.ShapeDtypeStruct((Rp, SLp), jnp.float32),
        grid_spec=pltpu.PrefetchScalarGridSpec(
            num_scalar_prefetch=0,
            grid=grid,
            in_specs=[
                pl.BlockSpec((row_tile, Hp), lambda i: (i, 0)),  # streamed activation rows
                pl.BlockSpec((Hp, SLp), lambda i: (0, 0)),       # pinned folded weight
                pl.BlockSpec((1, SLp), lambda i: (0, 0)),        # pinned folded bias
            ],
            out_specs=pl.BlockSpec((row_tile, SLp), lambda i: (i, 0)),
        ),
        compiler_params=pltpu.CompilerParams(
            dimension_semantics=("parallel",),   # megacore row-sharding on v7x
            vmem_limit_bytes=64 << 20,
        ),
    )(hs_pad, w2s, b2s)


# ----------------------------------------------------------------------------
# Parameters: init, folding and padding
# ----------------------------------------------------------------------------
def make_params(key, hidden, intent_labels_num, slot_labels_num, vocab, max_seq):
    ks = jax.random.split(key, 12)
    s = 0.02
    # nn.Linear stores weight as (out, in); pre-transpose to (in, out) for x @ W.
    wp = jax.random.normal(ks[0], (hidden, hidden), jnp.float32) * s
    w1 = jax.random.normal(ks[1], (hidden, hidden), jnp.float32) * s
    wi = jax.random.normal(ks[2], (intent_labels_num, hidden), jnp.float32) * s
    w2 = jax.random.normal(ks[3], (hidden, hidden), jnp.float32) * s
    ws = jax.random.normal(ks[4], (slot_labels_num, hidden), jnp.float32) * s
    return {
        "wp": wp.T, "bp": (jax.random.normal(ks[5], (hidden,)) * s).reshape(1, hidden),
        "w1": w1.T, "b1": (jax.random.normal(ks[6], (hidden,)) * s).reshape(1, hidden),
        "wi": wi.T, "bi": (jax.random.normal(ks[7], (intent_labels_num,)) * s).reshape(1, intent_labels_num),
        "w2": w2.T, "b2": (jax.random.normal(ks[8], (hidden,)) * s).reshape(1, hidden),
        "ws": ws.T, "bs": (jax.random.normal(ks[9], (slot_labels_num,)) * s).reshape(1, slot_labels_num),
        "tok_emb": jax.random.normal(ks[10], (vocab, hidden), jnp.float32) * s,
        "pos_emb": jax.random.normal(ks[11], (max_seq, hidden), jnp.float32) * s,
    }


def fold_and_pad_params(params, compute_dtype=jnp.bfloat16):
    """Fold fc1+intent / fc2+slot in f32 (exact at inference), pad to lane-dense shapes, cast."""
    H = params["wp"].shape[0]
    I = params["wi"].shape[1]
    SL = params["ws"].shape[1]
    Hp, Ip, SLp = _round_up(H, 128), _round_up(I, 128), _round_up(SL, 128)

    w1i = params["w1"] @ params["wi"]                 # [H, I]
    b1i = params["b1"] @ params["wi"] + params["bi"]  # [1, I]
    w2s = params["w2"] @ params["ws"]                 # [H, SL]
    b2s = params["b2"] @ params["ws"] + params["bs"]  # [1, SL]

    pad = lambda x, r, c: jnp.pad(x, ((0, r - x.shape[0]), (0, c - x.shape[1])))
    return {
        "wp":  pad(params["wp"], Hp, Hp).astype(compute_dtype),
        "bp":  pad(params["bp"], 1, Hp).astype(jnp.float32),
        "w1i": pad(w1i, Hp, Ip).astype(compute_dtype),
        "b1i": pad(b1i, 1, Ip).astype(jnp.float32),
        "w2s": pad(w2s, Hp, SLp).astype(compute_dtype),
        "b2s": pad(b2s, 1, SLp).astype(jnp.float32),
    }


# ----------------------------------------------------------------------------
# Forward pass (glue: synthetic BERT stand-in + padding + kernel calls)
# ----------------------------------------------------------------------------
def joint_intent_and_slot_forward(params, folded, input_ids, attention_mask,
                                  *, row_tile=512, compute_dtype=jnp.bfloat16):
    B, S = input_ids.shape
    H = params["tok_emb"].shape[1]
    I = params["wi"].shape[1]
    SL = params["ws"].shape[1]
    Hp = folded["wp"].shape[0]

    # Synthetic BERT stand-in (plain-JAX glue): token + position embeddings, masked.
    last_hidden_state = (
        params["tok_emb"][input_ids] + params["pos_emb"][None, :S, :]
    ) * attention_mask[..., None].astype(jnp.float32)                 # [B, S, H]

    cls_tok = last_hidden_state[:, 0, :]                              # [B, H]
    hs_flat = last_hidden_state.reshape(B * S, H)                     # [R, H]

    # Pad to hardware-native shapes (128 lanes, 8-aligned sublanes / row tile).
    R = B * S
    rt = min(row_tile, _round_up(R, 8))
    Rp = _round_up(R, rt)
    Bp = _round_up(B, 8)

    hs_pad = jnp.pad(hs_flat, ((0, Rp - R), (0, Hp - H))).astype(compute_dtype)
    cls_pad = jnp.pad(cls_tok, ((0, Bp - B), (0, Hp - H))).astype(compute_dtype)

    intent_pad = intent_head_pallas(cls_pad, folded["wp"], folded["bp"],
                                    folded["w1i"], folded["b1i"])
    slot_pad = slot_head_pallas(hs_pad, folded["w2s"], folded["b2s"], row_tile=rt)

    intent_logits = intent_pad[:B, :I]
    slot_logits = slot_pad[:R, :SL].reshape(B, S, SL)
    return intent_logits, slot_logits


def reference_forward(params, input_ids, attention_mask):
    """Plain-JAX f32, unfolded reference for sanity checking."""
    B, S = input_ids.shape
    H = params["tok_emb"].shape[1]
    last_hidden_state = (
        params["tok_emb"][input_ids] + params["pos_emb"][None, :S, :]
    ) * attention_mask[..., None].astype(jnp.float32)
    cls_tok = last_hidden_state[:, 0, :]
    pooled = jnp.tanh(cls_tok @ params["wp"] + params["bp"])
    dense_for_intent = pooled @ params["w1"] + params["b1"]
    intent_logits = dense_for_intent @ params["wi"] + params["bi"]
    dense_for_slot = last_hidden_state.reshape(B * S, H) @ params["w2"] + params["b2"]
    slot_logits = (dense_for_slot @ params["ws"] + params["bs"]).reshape(B, S, -1)
    return intent_logits, slot_logits


if __name__ == "__main__":
    B, S, H = 2, 8, 32
    VOCAB, INTENTS, SLOTS = 50, 7, 11

    key = jax.random.PRNGKey(0)
    k_ids, k_params = jax.random.split(key)

    input_ids = jax.random.randint(k_ids, (B, S), 0, VOCAB, dtype=jnp.int32)
    attention_mask = jnp.ones((B, S), dtype=jnp.int32)

    params = make_params(k_params, H, INTENTS, SLOTS, VOCAB, S)
    folded = fold_and_pad_params(params)

    fwd = jax.jit(functools.partial(joint_intent_and_slot_forward, params, folded))
    intent_logits, slot_logits = fwd(input_ids, attention_mask)
    jax.block_until_ready((intent_logits, slot_logits))

    assert intent_logits.shape == (B, INTENTS)
    assert slot_logits.shape == (B, S, SLOTS)

    # Sanity: bf16 Pallas path vs f32 unfolded reference.
    ref_intent, ref_slot = reference_forward(params, input_ids, attention_mask)
    assert jnp.allclose(intent_logits, ref_intent, rtol=5e-2, atol=2e-3)
    assert jnp.allclose(slot_logits, ref_slot, rtol=5e-2, atol=2e-3)

    print("KERNEL_OK")
</pallas_src>

<mosaic_0001>
module attributes {stable_mosaic.version = 11 : i64} {
  func.func @intent_kernel(%arg0: memref<8x128xbf16, #tpu.memory_space<vmem>>, %arg1: memref<128x128xbf16, #tpu.memory_space<vmem>>, %arg2: memref<1x128xf32, #tpu.memory_space<vmem>>, %arg3: memref<128x128xbf16, #tpu.memory_space<vmem>>, %arg4: memref<1x128xf32, #tpu.memory_space<vmem>>, %arg5: memref<8x128xf32, #tpu.memory_space<vmem>>) attributes {dimension_semantics = [], scalar_prefetch = 0 : i64, scratch_operands = 0 : i64, tpu.core_type = #tpu.core_type<tc>} {
    %c0 = arith.constant 0 : index
    %c0_0 = arith.constant 0 : index
    %0 = vector.load %arg0[%c0, %c0_0] : memref<8x128xbf16, #tpu.memory_space<vmem>>, vector<8x128xbf16>
    %c0_1 = arith.constant 0 : index
    %c0_2 = arith.constant 0 : index
    %1 = vector.load %arg1[%c0_1, %c0_2] : memref<128x128xbf16, #tpu.memory_space<vmem>>, vector<128x128xbf16>
    %cst = arith.constant dense<0.000000e+00> : vector<8x128xf32>
    %2 = tpu.matmul %0, %1, %cst {dimension_numbers = #tpu.dot_dimension_numbers<[1], [0], [0], [1], [0, 0, 1, 1], [], []>} : vector<8x128xbf16>, vector<128x128xbf16>, vector<8x128xf32> -> vector<8x128xf32>
    %c0_3 = arith.constant 0 : index
    %c0_4 = arith.constant 0 : index
    %3 = vector.load %arg2[%c0_3, %c0_4] : memref<1x128xf32, #tpu.memory_space<vmem>>, vector<1x128xf32>
    %4 = vector.broadcast %3 : vector<1x128xf32> to vector<8x128xf32>
    %5 = arith.addf %2, %4 : vector<8x128xf32>
    %6 = math.tanh %5 : vector<8x128xf32>
    %7 = arith.truncf %6 : vector<8x128xf32> to vector<8x128xbf16>
    %c0_5 = arith.constant 0 : index
    %c0_6 = arith.constant 0 : index
    %8 = vector.load %arg3[%c0_5, %c0_6] : memref<128x128xbf16, #tpu.memory_space<vmem>>, vector<128x128xbf16>
    %cst_7 = arith.constant dense<0.000000e+00> : vector<8x128xf32>
    %9 = tpu.matmul %7, %8, %cst_7 {dimension_numbers = #tpu.dot_dimension_numbers<[1], [0], [0], [1], [0, 0, 1, 1], [], []>} : vector<8x128xbf16>, vector<128x128xbf16>, vector<8x128xf32> -> vector<8x128xf32>
    %c0_8 = arith.constant 0 : index
    %c0_9 = arith.constant 0 : index
    %10 = vector.load %arg4[%c0_8, %c0_9] : memref<1x128xf32, #tpu.memory_space<vmem>>, vector<1x128xf32>
    %11 = vector.broadcast %10 : vector<1x128xf32> to vector<8x128xf32>
    %12 = arith.addf %9, %11 : vector<8x128xf32>
    %c0_10 = arith.constant 0 : index
    %c0_11 = arith.constant 0 : index
    %13 = vector.load %arg5[%c0_10, %c0_11] : memref<8x128xf32, #tpu.memory_space<vmem>>, vector<8x128xf32>
    tpu.vector_store %arg5[%c0_10, %c0_11], %12 {strides = array<i32>} : memref<8x128xf32, #tpu.memory_space<vmem>>, vector<8x128xf32>,
    return
  }
}

module attributes {stable_mosaic.version = 11 : i64} {
  func.func @slot_kernel(%arg0: i32, %arg1: memref<16x128xbf16, #tpu.memory_space<vmem>>, %arg2: memref<128x128xbf16, #tpu.memory_space<vmem>>, %arg3: memref<1x128xf32, #tpu.memory_space<vmem>>, %arg4: memref<16x128xf32, #tpu.memory_space<vmem>>) attributes {dimension_semantics = [#tpu.dimension_semantics<parallel>], iteration_bounds = array<i64: 1>, scalar_prefetch = 0 : i64, scratch_operands = 0 : i64, tpu.core_type = #tpu.core_type<tc>, window_params = [{transform_indices = @transform_0, window_bounds = array<i64: 16, 128>}, {pipeline_mode = #tpu.pipeline_mode<synchronous>, transform_indices = @transform_1, window_bounds = array<i64: 128, 128>}, {pipeline_mode = #tpu.pipeline_mode<synchronous>, transform_indices = @transform_2, window_bounds = array<i64: 1, 128>}, {transform_indices = @transform_3, window_bounds = array<i64: 16, 128>}]} {
    %c0 = arith.constant 0 : index
    %c0_0 = arith.constant 0 : index
    %0 = vector.load %arg1[%c0, %c0_0] : memref<16x128xbf16, #tpu.memory_space<vmem>>, vector<16x128xbf16>
    %c0_1 = arith.constant 0 : index
    %c0_2 = arith.constant 0 : index
    %1 = vector.load %arg2[%c0_1, %c0_2] : memref<128x128xbf16, #tpu.memory_space<vmem>>, vector<128x128xbf16>
    %cst = arith.constant dense<0.000000e+00> : vector<16x128xf32>
    %2 = tpu.matmul %0, %1, %cst {dimension_numbers = #tpu.dot_dimension_numbers<[1], [0], [0], [1], [0, 0, 1, 1], [], []>} : vector<16x128xbf16>, vector<128x128xbf16>, vector<16x128xf32> -> vector<16x128xf32>
    %c0_3 = arith.constant 0 : index
    %c0_4 = arith.constant 0 : index
    %3 = vector.load %arg3[%c0_3, %c0_4] : memref<1x128xf32, #tpu.memory_space<vmem>>, vector<1x128xf32>
    %4 = vector.broadcast %3 : vector<1x128xf32> to vector<16x128xf32>
    %5 = arith.addf %2, %4 : vector<16x128xf32>
    %c0_5 = arith.constant 0 : index
    %c0_6 = arith.constant 0 : index
    %6 = vector.load %arg4[%c0_5, %c0_6] : memref<16x128xf32, #tpu.memory_space<vmem>>, vector<16x128xf32>
    tpu.vector_store %arg4[%c0_5, %c0_6], %5 {strides = array<i32>} : memref<16x128xf32, #tpu.memory_space<vmem>>, vector<16x128xf32>,
    return
  }
  func.func @transform_0(%arg0: i32) -> (i32, i32) {
    %c0_i32 = arith.constant 0 : i32
    %c0_i32_0 = arith.constant 0 : i32
    return %arg0, %c0_i32 : i32, i32
  }
  func.func @transform_1(%arg0: i32) -> (i32, i32) {
    %c0_i32 = arith.constant 0 : i32
    %c0_i32_0 = arith.constant 0 : i32
    %c0_i32_1 = arith.constant 0 : i32
    return %c0_i32, %c0_i32_0 : i32, i32
  }
  func.func @transform_2(%arg0: i32) -> (i32, i32) {
    %c0_i32 = arith.constant 0 : i32
    %c0_i32_0 = arith.constant 0 : i32
    %c0_i32_1 = arith.constant 0 : i32
    return %c0_i32, %c0_i32_0 : i32, i32
  }
  func.func @transform_3(%arg0: i32) -> (i32, i32) {
    %c0_i32 = arith.constant 0 : i32
    %c0_i32_0 = arith.constant 0 : i32
    return %arg0, %c0_i32 : i32, i32
  }
}

</mosaic_0001>

<llo_original>
// kernel: joint_intent_and_slot_forward.3
$region0: #{joint_intent_and_slot_forward.3}
  #allocation0 [shape = 'u32[]', space=smem, size = 0x4, offset = 0x4, fixed_abs, tag = 'smem constant byte address 0x4 - core index']
  #allocation1 [shape = 'u32[144,128]{1,0:T(1,128)}', space=vmem, size = 0x12000, scoped, tag = 'internal scratch']
  %s0 = inlined_call_operand.hbm [shape: bf16[16,128], index: 0, kind: input, shape index: {}]
  %s1 = inlined_call_operand.hbm [shape: bf16[128,128], index: 1, kind: input, shape index: {}]
  %s2 = inlined_call_operand.hbm [shape: f32[1,128], index: 2, kind: input, shape index: {}]
  %s3 = inlined_call_operand.hbm [shape: f32[16,128], index: 3, kind: output, shape index: {}]
  %s4 = sld [smem:[#allocation0]]
  $region34: #{joint_intent_and_slot_forward.3} parent=0
    _
  %s6 = ssub.s32 1, %s4
  %s7 = scalar_select 0, %s6, %s4
  $region1: #{joint_intent_and_slot_forward.3} parent=0
    #allocation2 [shape = 'u8[4096]{0}', space=vmem, size = 0x1000, scoped, tag = 'input window, operand 0, single buffered']
    #allocation3 [shape = 's32[1]{0}', space=sflag, size = 0x4, scoped, tag = 'scoped memory for joint_intent_and_slot_forward.3']
    #allocation4 [shape = 's32[1]{0}', space=sflag, size = 0x4, scoped, tag = 'scoped memory for joint_intent_and_slot_forward.3']
    #allocation5 [shape = 'u8[32768]{0}', space=vmem, size = 0x8000, scoped, tag = 'input window, operand 1, single buffered']
    #allocation6 [shape = 's32[1]{0}', space=sflag, size = 0x4, scoped, tag = 'scoped memory for joint_intent_and_slot_forward.3']
    #allocation7 [shape = 'u8[512]{0}', space=vmem, size = 0x400, scoped, tag = 'input window, operand 2, single buffered']
    #allocation8 [shape = 'u8[8192]{0}', space=vmem, size = 0x2000, scoped, tag = 'output window, operand 0, single buffered']
    %8 = vsyncpa [#allocation3], 0
    %9 = vsyncpa [#allocation6], 0
    %10 = vsyncpa [#allocation4], 0
    // Predicated region
    $region2: #{joint_intent_and_slot_forward.3} parent=1 // pred_check
      _
    $region3: #{joint_intent_and_slot_forward.3} parent=1 // pred_check_branch
      %12 = sbr.rel (0) target = $region5
    $region4: #{joint_intent_and_slot_forward.3} parent=1 // pred_region
      %s14 = ssub.s32 128, 128
      %15 = vsyncadd [#allocation3], %s14
      %s16 = sshll.u32 [#allocation2], 4
      %s17 = int_to_ptr.vmem [resolvable:$true] %s16
      %22 = dma.hbm_to_vmem [thread:$0]  %s0, 128, %s17, [#allocation3], 64, 64, 4
    $region5: #{joint_intent_and_slot_forward.3} parent=1 // pred_fallthru
      _
    // Predicated region
    $region6: #{joint_intent_and_slot_forward.3} parent=1 // pred_check
      _
    $region7: #{joint_intent_and_slot_forward.3} parent=1 // pred_check_branch
      %24 = sbr.rel (0) target = $region9
    $region8: #{joint_intent_and_slot_forward.3} parent=1 // pred_region
      %s26 = ssub.s32 1024, 1024
      %27 = vsyncadd [#allocation6], %s26
      %s28 = sshll.u32 [#allocation5], 4
      %s29 = int_to_ptr.vmem [resolvable:$true] %s28
      %34 = dma.hbm_to_vmem [thread:$0]  %s1, 1024, %s29, [#allocation6], 64, 64, 4
    $region9: #{joint_intent_and_slot_forward.3} parent=1 // pred_fallthru
      _
    // Predicated region
    $region10: #{joint_intent_and_slot_forward.3} parent=1 // pred_check
      _
    $region11: #{joint_intent_and_slot_forward.3} parent=1 // pred_check_branch
      %36 = sbr.rel (0) target = $region13
    $region12: #{joint_intent_and_slot_forward.3} parent=1 // pred_region
      %s38 = ssub.s32 16, 16
      %39 = vsyncadd [#allocation6], %s38
      %s41 = sshll.u32 [#allocation7], 4
      %s42 = int_to_ptr.vmem [resolvable:$true] %s41
      %44 = dma.hbm_to_vmem [thread:$0]  %s2, 16, %s42, [#allocation6]
    $region13: #{joint_intent_and_slot_forward.3} parent=1 // pred_fallthru
      _
    // Predicated region
    $region14: #{joint_intent_and_slot_forward.3} parent=1 // pred_check
      _
    $region15: #{joint_intent_and_slot_forward.3} parent=1 // pred_check_branch
      %46 = sbr.rel (0) target = $region17
    $region16: #{joint_intent_and_slot_forward.3} parent=1 // pred_region
      %47 = dma.done [#allocation3], 128
    $region17: #{joint_intent_and_slot_forward.3} parent=1 // pred_fallthru
      _
    // Predicated region
    $region18: #{joint_intent_and_slot_forward.3} parent=1 // pred_check
      _
    $region19: #{joint_intent_and_slot_forward.3} parent=1 // pred_check_branch
      %49 = sbr.rel (0) target = $region21
    $region20: #{joint_intent_and_slot_forward.3} parent=1 // pred_region
      %50 = dma.done [#allocation6], 1024
    $region21: #{joint_intent_and_slot_forward.3} parent=1 // pred_fallthru
      _
    // Predicated region
    $region22: #{joint_intent_and_slot_forward.3} parent=1 // pred_check
      _
    $region23: #{joint_intent_and_slot_forward.3} parent=1 // pred_check_branch
      %52 = sbr.rel (0) target = $region25
    $region24: #{joint_intent_and_slot_forward.3} parent=1 // pred_region
      %53 = dma.done [#allocation6], 16
    $region25: #{joint_intent_and_slot_forward.3} parent=1 // pred_fallthru
      _
    %v55 = vld [vmem:[#allocation2] sm:$0xf]
    %v56 = vld [vmem:[#allocation2 + $0x4] sm:$0xf]
    %v57 = vld [vmem:[#allocation5] sm:$0xf]
    %v58 = vld [vmem:[#allocation5 + $0x4] sm:$0xf]
    %v59 = vld [vmem:[#allocation5 + $0x8] sm:$0xf]
    %v60 = vld [vmem:[#allocation5 + $0xc] sm:$0xf]
    %v61 = vld [vmem:[#allocation5 + $0x10] sm:$0xf]
    %v62 = vld [vmem:[#allocation5 + $0x14] sm:$0xf]
    %v63 = vld [vmem:[#allocation5 + $0x18] sm:$0xf]
    %v64 = vld [vmem:[#allocation5 + $0x1c] sm:$0xf]
    %v65 = vld [vmem:[#allocation5 + $0x20] sm:$0xf]
    %v66 = vld [vmem:[#allocation5 + $0x24] sm:$0xf]
    %v67 = vld [vmem:[#allocation5 + $0x28] sm:$0xf]
    %v68 = vld [vmem:[#allocation5 + $0x2c] sm:$0xf]
    %v69 = vld [vmem:[#allocation5 + $0x30] sm:$0xf]
    %v70 = vld [vmem:[#allocation5 + $0x34] sm:$0xf]
    %v71 = vld [vmem:[#allocation5 + $0x38] sm:$0xf]
    %v72 = vld [vmem:[#allocation5 + $0x3c] sm:$0xf]
    %v73 = vld [vmem:[#allocation7] sm:$0x1]
    %v75 = vlaneseq
    %v76 = vshrl.u32 %v75, 7
    %v77 = vsub.s32 0, %v76
    %v78 = vrot.slane %v73, %v77
    %v82 = vunpack.c.l.b16 %v55
    %v83 = vunpack.c.l.b16 %v56
    %v84 = vpack.c.b16 %v83, %v82
    %v102 = vunpack.c.l.b16 %v57
    %v103 = vunpack.c.l.b16 %v58
    %v104 = vunpack.c.l.b16 %v59
    %v105 = vunpack.c.l.b16 %v60
    %v106 = vunpack.c.l.b16 %v61
    %v107 = vunpack.c.l.b16 %v62
    %v108 = vunpack.c.l.b16 %v63
    %v109 = vunpack.c.l.b16 %v64
    %v110 = vunpack.c.l.b16 %v65
    %v111 = vunpack.c.l.b16 %v66
    %v112 = vunpack.c.l.b16 %v67
    %v113 = vunpack.c.l.b16 %v68
    %v114 = vunpack.c.l.b16 %v69
    %v115 = vunpack.c.l.b16 %v70
    %v116 = vunpack.c.l.b16 %v71
    %v117 = vunpack.c.l.b16 %v72
    %v118 = vpack.c.b16 %v103, %v102
    %v119 = vpack.c.b16 %v105, %v104
    %v120 = vpack.c.b16 %v107, %v106
    %v121 = vpack.c.b16 %v109, %v108
    %v122 = vpack.c.b16 %v111, %v110
    %v123 = vpack.c.b16 %v113, %v112
    %v124 = vpack.c.b16 %v115, %v114
    %v125 = vpack.c.b16 %v117, %v116
    %134 = vmatprep.subr.bf16.mxu0 0
    %135 = vmatpush1.bf16.msra.mxu0 %v118
    %136 = vmatprep.subr.bf16.mxu0 0
    %137 = vmatpush1.bf16.msra.mxu0 %v119
    %138 = vmatprep.subr.bf16.mxu0 0
    %139 = vmatpush1.bf16.msra.mxu0 %v120
    %140 = vmatprep.subr.bf16.mxu0 0
    %141 = vmatpush1.bf16.msra.mxu0 %v121
    %142 = vmatprep.subr.bf16.mxu0 0
    %143 = vmatpush1.bf16.msra.mxu0 %v122
    %144 = vmatprep.subr.bf16.mxu0 0
    %145 = vmatpush1.bf16.msra.mxu0 %v123
    %146 = vmatprep.subr.bf16.mxu0 0
    %147 = vmatpush1.bf16.msra.mxu0 %v124
    %148 = vmatprep.subr.bf16.mxu0 0
    %149 = vmatpush1.bf16.msra.mxu0 %v125
    %150 = vmatprep.subr.bf16.mxu0 0
    %151 = vmatpush1.bf16.msra.mxu0 0
    %152 = vmatprep.subr.bf16.mxu0 0
    %153 = vmatpush1.bf16.msra.mxu0 0
    %154 = vmatprep.subr.bf16.mxu0 0
    %155 = vmatpush1.bf16.msra.mxu0 0
    %156 = vmatprep.subr.bf16.mxu0 0
    %157 = vmatpush1.bf16.msra.mxu0 0
    %158 = vmatprep.subr.bf16.mxu0 0
    %159 = vmatpush1.bf16.msra.mxu0 0
    %160 = vmatprep.subr.bf16.mxu0 0
    %161 = vmatpush1.bf16.msra.mxu0 0
    %162 = vmatprep.subr.bf16.mxu0 0
    %163 = vmatpush1.bf16.msra.mxu0 0
    %164 = vmatprep.subr.bf16.mxu0 0
    %165 = vmatpush1.bf16.msra.mxu0 0
    %166 = vmatprep.mubr.bf16.mxu0 0
    %167 = vmatmul.mubr.bf16.gmra.mrb[0].mxu0 %v84
    %v168 = vpop.f32.mrb[0].mxu0
    %v169 = vadd.f32 %v78, %v168
    %v170 = vpop.f32.mrb[0].mxu0
    %v171 = vpop.f32.mrb[0].mxu0
    %v172 = vadd.f32 %v78, %v171
    %v173 = vpop.f32.mrb[0].mxu0
    %174 = vdwg.mxu0
    %175 = vst [vmem:[#allocation8] sm:$0xff] %v169
    %176 = vst [vmem:[#allocation8 + $0x8] sm:$0xff] %v172
    // Predicated region
    $region26: #{joint_intent_and_slot_forward.3} parent=1 // pred_check
      _
    $region27: #{joint_intent_and_slot_forward.3} parent=1 // pred_check_branch
      %178 = sbr.rel (0) target = $region29
    $region28: #{joint_intent_and_slot_forward.3} parent=1 // pred_region
      %s180 = ssub.s32 256, 256
      %181 = vsyncadd [#allocation4], %s180
      %s182 = sshll.u32 [#allocation8], 4
      %s183 = int_to_ptr.vmem [resolvable:$true] %s182
      %188 = dma.vmem_to_hbm [thread:$0]  %s183, 256, %s3, [#allocation4], 128, 128, 8
    $region29: #{joint_intent_and_slot_forward.3} parent=1 // pred_fallthru
      _
    // Predicated region
    $region30: #{joint_intent_and_slot_forward.3} parent=1 // pred_check
      _
    $region31: #{joint_intent_and_slot_forward.3} parent=1 // pred_check_branch
      %190 = sbr.rel (0) target = $region33
    $region32: #{joint_intent_and_slot_forward.3} parent=1 // pred_region
      %191 = dma.done [#allocation4], 256
    $region33: #{joint_intent_and_slot_forward.3} parent=1 // pred_fallthru
      _
    %192 = vsyncpa [#allocation3], 1
    %193 = vsyncpa [#allocation6], 1
    %194 = vsyncpa [#allocation4], 1

// kernel: joint_intent_and_slot_forward.2
$region0: #{joint_intent_and_slot_forward.2}
  #allocation0 [shape = 'u32[]', space=smem, size = 0x4, offset = 0x4, fixed_abs, tag = 'smem constant byte address 0x4 - core index']
  #allocation1 [shape = 'u32[144,128]{1,0:T(1,128)}', space=vmem, size = 0x12000, scoped, tag = 'internal scratch']
  %s0 = inlined_call_operand.hbm [shape: bf16[8,128], index: 0, kind: input, shape index: {}]
  %s1 = inlined_call_operand.hbm [shape: bf16[128,128], index: 1, kind: input, shape index: {}]
  %s2 = inlined_call_operand.hbm [shape: f32[1,128], index: 2, kind: input, shape index: {}]
  %s3 = inlined_call_operand.hbm [shape: bf16[128,128], index: 3, kind: input, shape index: {}]
  %s4 = inlined_call_operand.hbm [shape: f32[1,128], index: 4, kind: input, shape index: {}]
  %s5 = inlined_call_operand.hbm [shape: f32[8,128], index: 5, kind: output, shape index: {}]
  %s6 = sld [smem:[#allocation0]]
  $region50: #{joint_intent_and_slot_forward.2} parent=0
    _
  %s8 = ssub.s32 1, %s6
  %s9 = scalar_select 0, %s8, %s6
  $region1: #{joint_intent_and_slot_forward.2} parent=0
    #allocation2 [shape = 'u8[2048]{0}', space=vmem, size = 0x800, scoped, tag = 'input window, operand 0, single buffered']
    #allocation3 [shape = 's32[1]{0}', space=sflag, size = 0x4, scoped, tag = 'scoped memory for joint_intent_and_slot_forward.2']
    #allocation4 [shape = 's32[1]{0}', space=sflag, size = 0x4, scoped, tag = 'scoped memory for joint_intent_and_slot_forward.2']
    #allocation5 [shape = 'u8[32768]{0}', space=vmem, size = 0x8000, scoped, tag = 'input window, operand 1, single buffered']
    #allocation6 [shape = 's32[1]{0}', space=sflag, size = 0x4, scoped, tag = 'scoped memory for joint_intent_and_slot_forward.2']
    #allocation7 [shape = 'u8[512]{0}', space=vmem, size = 0x400, scoped, tag = 'input window, operand 2, single buffered']
    #allocation8 [shape = 'u8[32768]{0}', space=vmem, size = 0x8000, scoped, tag = 'input window, operand 3, single buffered']
    #allocation9 [shape = 's32[1]{0}', space=sflag, size = 0x4, scoped, tag = 'scoped memory for joint_intent_and_slot_forward.2']
    #allocation10 [shape = 'u8[512]{0}', space=vmem, size = 0x400, scoped, tag = 'input window, operand 4, single buffered']
    #allocation11 [shape = 'u8[4096]{0}', space=vmem, size = 0x1000, scoped, tag = 'output window, operand 0, single buffered']
    %10 = vsyncpa [#allocation3], 0
    %11 = vsyncpa [#allocation6], 0
    %12 = vsyncpa [#allocation9], 0
    %13 = vsyncpa [#allocation4], 0
    // Predicated region
    $region2: #{joint_intent_and_slot_forward.2} parent=1 // pred_check
      _
    $region3: #{joint_intent_and_slot_forward.2} parent=1 // pred_check_branch
      %15 = sbr.rel (0) target = $region5
    $region4: #{joint_intent_and_slot_forward.2} parent=1 // pred_region
      %s17 = ssub.s32 64, 64
      %18 = vsyncadd [#allocation3], %s17
      %s20 = sshll.u32 [#allocation2], 4
      %s21 = int_to_ptr.vmem [resolvable:$true] %s20
      %23 = dma.hbm_to_vmem [thread:$0]  %s0, 64, %s21, [#allocation3]
    $region5: #{joint_intent_and_slot_forward.2} parent=1 // pred_fallthru
      _
    // Predicated region
    $region6: #{joint_intent_and_slot_forward.2} parent=1 // pred_check
      _
    $region7: #{joint_intent_and_slot_forward.2} parent=1 // pred_check_branch
      %25 = sbr.rel (0) target = $region9
    $region8: #{joint_intent_and_slot_forward.2} parent=1 // pred_region
      %s27 = ssub.s32 1024, 1024
      %28 = vsyncadd [#allocation6], %s27
      %s29 = sshll.u32 [#allocation5], 4
      %s30 = int_to_ptr.vmem [resolvable:$true] %s29
      %35 = dma.hbm_to_vmem [thread:$0]  %s1, 1024, %s30, [#allocation6], 64, 64, 4
    $region9: #{joint_intent_and_slot_forward.2} parent=1 // pred_fallthru
      _
    // Predicated region
    $region10: #{joint_intent_and_slot_forward.2} parent=1 // pred_check
      _
    $region11: #{joint_intent_and_slot_forward.2} parent=1 // pred_check_branch
      %37 = sbr.rel (0) target = $region13
    $region12: #{joint_intent_and_slot_forward.2} parent=1 // pred_region
      %s39 = ssub.s32 16, 16
      %40 = vsyncadd [#allocation6], %s39
      %s42 = sshll.u32 [#allocation7], 4
      %s43 = int_to_ptr.vmem [resolvable:$true] %s42
      %45 = dma.hbm_to_vmem [thread:$0]  %s2, 16, %s43, [#allocation6]
    $region13: #{joint_intent_and_slot_forward.2} parent=1 // pred_fallthru
      _
    // Predicated region
    $region14: #{joint_intent_and_slot_forward.2} parent=1 // pred_check
      _
    $region15: #{joint_intent_and_slot_forward.2} parent=1 // pred_check_branch
      %47 = sbr.rel (0) target = $region17
    $region16: #{joint_intent_and_slot_forward.2} parent=1 // pred_region
      %s49 = ssub.s32 1024, 1024
      %50 = vsyncadd [#allocation9], %s49
      %s51 = sshll.u32 [#allocation8], 4
      %s52 = int_to_ptr.vmem [resolvable:$true] %s51
      %57 = dma.hbm_to_vmem [thread:$0]  %s3, 1024, %s52, [#allocation9], 64, 64, 4
    $region17: #{joint_intent_and_slot_forward.2} parent=1 // pred_fallthru
      _
    // Predicated region
    $region18: #{joint_intent_and_slot_forward.2} parent=1 // pred_check
      _
    $region19: #{joint_intent_and_slot_forward.2} parent=1 // pred_check_branch
      %59 = sbr.rel (0) target = $region21
    $region20: #{joint_intent_and_slot_forward.2} parent=1 // pred_region
      %s61 = ssub.s32 16, 16
      %62 = vsyncadd [#allocation9], %s61
      %s64 = sshll.u32 [#allocation10], 4
      %s65 = int_to_ptr.vmem [resolvable:$true] %s64
      %67 = dma.hbm_to_vmem [thread:$0]  %s4, 16, %s65, [#allocation9]
    $region21: #{joint_intent_and_slot_forward.2} parent=1 // pred_fallthru
      _
    // Predicated region
    $region22: #{joint_intent_and_slot_forward.2} parent=1 // pred_check
      _
    $region23: #{joint_intent_and_slot_forward.2} parent=1 // pred_check_branch
      %69 = sbr.rel (0) target = $region25
    $region24: #{joint_intent_and_slot_forward.2} parent=1 // pred_region
      %70 = dma.done [#allocation3], 64
    $region25: #{joint_intent_and_slot_forward.2} parent=1 // pred_fallthru
      _
    // Predicated region
    $region26: #{joint_intent_and_slot_forward.2} parent=1 // pred_check
      _
    $region27: #{joint_intent_and_slot_forward.2} parent=1 // pred_check_branch
      %72 = sbr.rel (0) target = $region29
    $region28: #{joint_intent_and_slot_forward.2} parent=1 // pred_region
      %73 = dma.done [#allocation6], 1024
    $region29: #{joint_intent_and_slot_forward.2} parent=1 // pred_fallthru
      _
    // Predicated region
    $region30: #{joint_intent_and_slot_forward.2} parent=1 // pred_check
      _
    $region31: #{joint_intent_and_slot_forward.2} parent=1 // pred_check_branch
      %75 = sbr.rel (0) target = $region33
    $region32: #{joint_intent_and_slot_forward.2} parent=1 // pred_region
      %76 = dma.done [#allocation6], 16
    $region33: #{joint_intent_and_slot_forward.2} parent=1 // pred_fallthru
      _
    // Predicated region
    $region34: #{joint_intent_and_slot_forward.2} parent=1 // pred_check
      _
    $region35: #{joint_intent_and_slot_forward.2} parent=1 // pred_check_branch
      %78 = sbr.rel (0) target = $region37
    $region36: #{joint_intent_and_slot_forward.2} parent=1 // pred_region
      %79 = dma.done [#allocation9], 1024
    $region37: #{joint_intent_and_slot_forward.2} parent=1 // pred_fallthru
      _
    // Predicated region
    $region38: #{joint_intent_and_slot_forward.2} parent=1 // pred_check
      _
    $region39: #{joint_intent_and_slot_forward.2} parent=1 // pred_check_branch
      %81 = sbr.rel (0) target = $region41
    $region40: #{joint_intent_and_slot_forward.2} parent=1 // pred_region
      %82 = dma.done [#allocation9], 16
    $region41: #{joint_intent_and_slot_forward.2} parent=1 // pred_fallthru
      _
    %v84 = vld [vmem:[#allocation2] sm:$0xf]
    %v85 = vld [vmem:[#allocation5] sm:$0xf]
    %v86 = vld [vmem:[#allocation5 + $0x4] sm:$0xf]
    %v87 = vld [vmem:[#allocation5 + $0x8] sm:$0xf]
    %v88 = vld [vmem:[#allocation5 + $0xc] sm:$0xf]
    %v89 = vld [vmem:[#allocation5 + $0x10] sm:$0xf]
    %v90 = vld [vmem:[#allocation5 + $0x14] sm:$0xf]
    %v91 = vld [vmem:[#allocation5 + $0x18] sm:$0xf]
    %v92 = vld [vmem:[#allocation5 + $0x1c] sm:$0xf]
    %v93 = vld [vmem:[#allocation5 + $0x20] sm:$0xf]
    %v94 = vld [vmem:[#allocation5 + $0x24] sm:$0xf]
    %v95 = vld [vmem:[#allocation5 + $0x28] sm:$0xf]
    %v96 = vld [vmem:[#allocation5 + $0x2c] sm:$0xf]
    %v97 = vld [vmem:[#allocation5 + $0x30] sm:$0xf]
    %v98 = vld [vmem:[#allocation5 + $0x34] sm:$0xf]
    %v99 = vld [vmem:[#allocation5 + $0x38] sm:$0xf]
    %v100 = vld [vmem:[#allocation5 + $0x3c] sm:$0xf]
    %v101 = vld [vmem:[#allocation7] sm:$0x1]
    %v103 = vlaneseq
    %v104 = vshrl.u32 %v103, 7
    %v105 = vsub.s32 0, %v104
    %v106 = vrot.slane %v101, %v105
    %v124 = vunpack.c.l.b16 %v85
    %v125 = vunpack.c.l.b16 %v86
    %v126 = vunpack.c.l.b16 %v87
    %v127 = vunpack.c.l.b16 %v88
    %v128 = vunpack.c.l.b16 %v89
    %v129 = vunpack.c.l.b16 %v90
    %v130 = vunpack.c.l.b16 %v91
    %v131 = vunpack.c.l.b16 %v92
    %v132 = vunpack.c.l.b16 %v93
    %v133 = vunpack.c.l.b16 %v94
    %v134 = vunpack.c.l.b16 %v95
    %v135 = vunpack.c.l.b16 %v96
    %v136 = vunpack.c.l.b16 %v97
    %v137 = vunpack.c.l.b16 %v98
    %v138 = vunpack.c.l.b16 %v99
    %v139 = vunpack.c.l.b16 %v100
    %v140 = vpack.c.b16 %v125, %v124
    %v141 = vpack.c.b16 %v127, %v126
    %v142 = vpack.c.b16 %v129, %v128
    %v143 = vpack.c.b16 %v131, %v130
    %v144 = vpack.c.b16 %v133, %v132
    %v145 = vpack.c.b16 %v135, %v134
    %v146 = vpack.c.b16 %v137, %v136
    %v147 = vpack.c.b16 %v139, %v138
    %156 = vmatprep.subr.bf16.mxu0 0
    %157 = vmatpush1.bf16.msra.mxu0 %v140
    %158 = vmatprep.subr.bf16.mxu0 0
    %159 = vmatpush1.bf16.msra.mxu0 %v141
    %160 = vmatprep.subr.bf16.mxu0 0
    %161 = vmatpush1.bf16.msra.mxu0 %v142
    %162 = vmatprep.subr.bf16.mxu0 0
    %163 = vmatpush1.bf16.msra.mxu0 %v143
    %164 = vmatprep.subr.bf16.mxu0 0
    %165 = vmatpush1.bf16.msra.mxu0 %v144
    %166 = vmatprep.subr.bf16.mxu0 0
    %167 = vmatpush1.bf16.msra.mxu0 %v145
    %168 = vmatprep.subr.bf16.mxu0 0
    %169 = vmatpush1.bf16.msra.mxu0 %v146
    %170 = vmatprep.subr.bf16.mxu0 0
    %171 = vmatpush1.bf16.msra.mxu0 %v147
    %172 = vmatprep.subr.bf16.mxu0 0
    %173 = vmatpush1.bf16.msra.mxu0 0
    %174 = vmatprep.subr.bf16.mxu0 0
    %175 = vmatpush1.bf16.msra.mxu0 0
    %176 = vmatprep.subr.bf16.mxu0 0
    %177 = vmatpush1.bf16.msra.mxu0 0
    %178 = vmatprep.subr.bf16.mxu0 0
    %179 = vmatpush1.bf16.msra.mxu0 0
    %180 = vmatprep.subr.bf16.mxu0 0
    %181 = vmatpush1.bf16.msra.mxu0 0
    %182 = vmatprep.subr.bf16.mxu0 0
    %183 = vmatpush1.bf16.msra.mxu0 0
    %184 = vmatprep.subr.bf16.mxu0 0
    %185 = vmatpush1.bf16.msra.mxu0 0
    %186 = vmatprep.subr.bf16.mxu0 0
    %187 = vmatpush1.bf16.msra.mxu0 0
    %188 = vmatprep.mubr.bf16.mxu0 0
    %189 = vmatmul.mubr.bf16.gmra.mrb[0].mxu0 %v84
    %v190 = vpop.f32.mrb[0].mxu0
    %v191 = vadd.f32 %v106, %v190
    %v192 = vpop.f32.mrb[0].mxu0
    %v193 = vpop.f32.mrb[0].mxu0
    %v194 = vpop.f32.mrb[0].mxu0
    %195 = vdwg.mxu0
    %v196 = vtanh.pop %v191
    %v197 = vpack.c.bf16 %v196, %v196
    %v198 = vld [vmem:[#allocation8] sm:$0xf]
    %v199 = vld [vmem:[#allocation8 + $0x4] sm:$0xf]
    %v200 = vld [vmem:[#allocation8 + $0x8] sm:$0xf]
    %v201 = vld [vmem:[#allocation8 + $0xc] sm:$0xf]
    %v202 = vld [vmem:[#allocation8 + $0x10] sm:$0xf]
    %v203 = vld [vmem:[#allocation8 + $0x14] sm:$0xf]
    %v204 = vld [vmem:[#allocation8 + $0x18] sm:$0xf]
    %v205 = vld [vmem:[#allocation8 + $0x1c] sm:$0xf]
    %v206 = vld [vmem:[#allocation8 + $0x20] sm:$0xf]
    %v207 = vld [vmem:[#allocation8 + $0x24] sm:$0xf]
    %v208 = vld [vmem:[#allocation8 + $0x28] sm:$0xf]
    %v209 = vld [vmem:[#allocation8 + $0x2c] sm:$0xf]
    %v210 = vld [vmem:[#allocation8 + $0x30] sm:$0xf]
    %v211 = vld [vmem:[#allocation8 + $0x34] sm:$0xf]
    %v212 = vld [vmem:[#allocation8 + $0x38] sm:$0xf]
    %v213 = vld [vmem:[#allocation8 + $0x3c] sm:$0xf]
    %v214 = vld [vmem:[#allocation10] sm:$0x1]
    %v216 = vlaneseq
    %v217 = vshrl.u32 %v216, 7
    %v218 = vsub.s32 0, %v217
    %v219 = vrot.slane %v214, %v218
    %v237 = vunpack.c.l.b16 %v198
    %v238 = vunpack.c.l.b16 %v199
    %v239 = vunpack.c.l.b16 %v200
    %v240 = vunpack.c.l.b16 %v201
    %v241 = vunpack.c.l.b16 %v202
    %v242 = vunpack.c.l.b16 %v203
    %v243 = vunpack.c.l.b16 %v204
    %v244 = vunpack.c.l.b16 %v205
    %v245 = vunpack.c.l.b16 %v206
    %v246 = vunpack.c.l.b16 %v207
    %v247 = vunpack.c.l.b16 %v208
    %v248 = vunpack.c.l.b16 %v209
    %v249 = vunpack.c.l.b16 %v210
    %v250 = vunpack.c.l.b16 %v211
    %v251 = vunpack.c.l.b16 %v212
    %v252 = vunpack.c.l.b16 %v213
    %v253 = vpack.c.b16 %v238, %v237
    %v254 = vpack.c.b16 %v240, %v239
    %v255 = vpack.c.b16 %v242, %v241
    %v256 = vpack.c.b16 %v244, %v243
    %v257 = vpack.c.b16 %v246, %v245
    %v258 = vpack.c.b16 %v248, %v247
    %v259 = vpack.c.b16 %v250, %v249
    %v260 = vpack.c.b16 %v252, %v251
    %269 = vmatprep.subr.bf16.mxu0 0
    %270 = vmatpush1.bf16.msra.mxu0 %v253
    %271 = vmatprep.subr.bf16.mxu0 0
    %272 = vmatpush1.bf16.msra.mxu0 %v254
    %273 = vmatprep.subr.bf16.mxu0 0
    %274 = vmatpush1.bf16.msra.mxu0 %v255
    %275 = vmatprep.subr.bf16.mxu0 0
    %276 = vmatpush1.bf16.msra.mxu0 %v256
    %277 = vmatprep.subr.bf16.mxu0 0
    %278 = vmatpush1.bf16.msra.mxu0 %v257
    %279 = vmatprep.subr.bf16.mxu0 0
    %280 = vmatpush1.bf16.msra.mxu0 %v258
    %281 = vmatprep.subr.bf16.mxu0 0
    %282 = vmatpush1.bf16.msra.mxu0 %v259
    %283 = vmatprep.subr.bf16.mxu0 0
    %284 = vmatpush1.bf16.msra.mxu0 %v260
    %285 = vmatprep.subr.bf16.mxu0 0
    %286 = vmatpush1.bf16.msra.mxu0 0
    %287 = vmatprep.subr.bf16.mxu0 0
    %288 = vmatpush1.bf16.msra.mxu0 0
    %289 = vmatprep.subr.bf16.mxu0 0
    %290 = vmatpush1.bf16.msra.mxu0 0
    %291 = vmatprep.subr.bf16.mxu0 0
    %292 = vmatpush1.bf16.msra.mxu0 0
    %293 = vmatprep.subr.bf16.mxu0 0
    %294 = vmatpush1.bf16.msra.mxu0 0
    %295 = vmatprep.subr.bf16.mxu0 0
    %296 = vmatpush1.bf16.msra.mxu0 0
    %297 = vmatprep.subr.bf16.mxu0 0
    %298 = vmatpush1.bf16.msra.mxu0 0
    %299 = vmatprep.subr.bf16.mxu0 0
    %300 = vmatpush1.bf16.msra.mxu0 0
    %301 = vmatprep.mubr.bf16.mxu0 0
    %302 = vmatmul.mubr.bf16.gmra.mrb[0].mxu0 %v197
    %v303 = vpop.f32.mrb[0].mxu0
    %v304 = vadd.f32 %v219, %v303
    %v305 = vpop.f32.mrb[0].mxu0
    %v306 = vpop.f32.mrb[0].mxu0
    %v307 = vpop.f32.mrb[0].mxu0
    %308 = vdwg.mxu0
    %309 = vst [vmem:[#allocation11] sm:$0xff] %v304
    // Predicated region
    $region42: #{joint_intent_and_slot_forward.2} parent=1 // pred_check
      _
    $region43: #{joint_intent_and_slot_forward.2} parent=1 // pred_check_branch
      %311 = sbr.rel (0) target = $region45
    $region44: #{joint_intent_and_slot_forward.2} parent=1 // pred_region
      %s313 = ssub.s32 128, 128
      %314 = vsyncadd [#allocation4], %s313
      %s316 = sshll.u32 [#allocation11], 4
      %s317 = int_to_ptr.vmem [resolvable:$true] %s316
      %319 = dma.vmem_to_hbm [thread:$0]  %s317, 128, %s5, [#allocation4]
    $region45: #{joint_intent_and_slot_forward.2} parent=1 // pred_fallthru
      _
    // Predicated region
    $region46: #{joint_intent_and_slot_forward.2} parent=1 // pred_check
      _
    $region47: #{joint_intent_and_slot_forward.2} parent=1 // pred_check_branch
      %321 = sbr.rel (0) target = $region49
    $region48: #{joint_intent_and_slot_forward.2} parent=1 // pred_region
      %322 = dma.done [#allocation4], 128
    $region49: #{joint_intent_and_slot_forward.2} parent=1 // pred_fallthru
      _
    %323 = vsyncpa [#allocation3], 1
    %324 = vsyncpa [#allocation6], 1
    %325 = vsyncpa [#allocation9], 1
    %326 = vsyncpa [#allocation4], 1

</llo_original>
